<compile_context>
chip_gen: v6e
topology: v6e:2x2x1
jax: 0.10.0
libtpu: 0.0.40
codegen_flags: <defaults>
</compile_context>

<pallas_src>
import jax
import jax.numpy as jnp
from jax import lax
from jax.experimental import pallas as pl
from jax.experimental.pallas import tpu as pltpu

LANE = 128


# ----------------------------------------------------------------------------
# helpers
# ----------------------------------------------------------------------------
def _round_up(x, m):
    return ((x + m - 1) // m) * m


def _tpu_vmem_and_cores():
    """(vmem_capacity_bytes, multi_tensorcore?) with conservative fallbacks."""
    vmem = 64 << 20           # smallest per-TC VMEM across v5e / v6e / v7x
    multi_tc = True           # conservative default: keep >= 2 grid steps
    try:
        vmem = int(pltpu.get_tpu_info().vmem_capacity_bytes)
    except Exception:
        pass
    try:
        kind = jax.devices()[0].device_kind.lower()
        if any(s in kind for s in ("v5 lite", "v5e", "v5litepod", "v6 lite", "v6e")):
            multi_tc = False  # single TensorCore per device: grid is a serial loop
        elif any(s in kind for s in ("v4", "v5p", "v7")):
            multi_tc = True   # megacore / v7x: 2 TCs share the "parallel" axis
    except Exception:
        pass
    return vmem, multi_tc


def _pick_bb(B, Lq, La, Dp, itemsize, vmem_bytes, multi_tc):
    """Batch elements per attention grid step, budgeted against the actual
    generation's VMEM (~40% of capacity, leaving headroom for compiler
    scratch); on multi-TC parts keep >= 2 grid steps so both cores get work."""
    budget = int(vmem_bytes * 0.4)
    per_b = (2 * 2 * (Lq + La) * Dp * itemsize   # double-buffered in+out blocks
             + 4 * Lq * La * 4                   # e / p / w_a / w_q (f32)
             + (Lq + La) * Dp * 4)               # h_a / h_q (f32)
    best = 1
    for bb in range(1, B + 1):
        if B % bb:
            continue
        if multi_tc and B >= 2 and B // bb < 2:
            continue
        if bb * per_b <= budget:
            best = bb
    return best


def _pick_row_tile(n, max_rows=512):
    """Row tile for the merged projection: full block if small, else the
    largest multiple-of-8 divisor <= max_rows (falls back to a single block)."""
    if n <= max_rows:
        return n
    best = n
    for t in range(8, max_rows + 1, 8):
        if n % t == 0:
            best = t
    return best


# ----------------------------------------------------------------------------
# AttnModule (the hot path)
# ----------------------------------------------------------------------------
def _attn_kernel(q_ref, a_ref, ta_ref, tq_ref):
    # q: (BB, Lq, Dp), a: (BB, La, Dp), both lane-dense (Dp % 128 == 0).
    q = q_ref[...]
    a = a_ref[...]

    # e_qa[b,q,a] = sum_d q[b,q,d] * a[b,a,d] -- contract the lane dim of BOTH
    # operands (no transposed copy of `a` needed). Operands stay in the input
    # dtype (bf16-native MXU path for bf16 callers), f32 accumulation.
    e = lax.dot_general(q, a, (((2,), (2,)), ((0,), (0,))),
                        preferred_element_type=jnp.float32)

    # Per-axis numerically-stable softmaxes (robust when a whole row/col sits
    # far below the global max). approx reciprocal -> EUP vrcp (free slot).
    p_a = jnp.exp(e - jnp.max(e, axis=1, keepdims=True))
    w_a = p_a * pl.reciprocal(jnp.sum(p_a, axis=1, keepdims=True), approx=True)
    p_q = jnp.exp(e - jnp.max(e, axis=2, keepdims=True))
    w_q = p_q * pl.reciprocal(jnp.sum(p_q, axis=2, keepdims=True), approx=True)
    w_a = w_a.astype(q.dtype)
    w_q = w_q.astype(a.dtype)

    # h_a[b,a,d] = sum_q w_a[b,q,a] * q[b,q,d]
    h_a = lax.dot_general(w_a, q, (((1,), (1,)), ((0,), (0,))),
                          preferred_element_type=jnp.float32)
    # h_q[b,q,d] = sum_a w_q[b,q,a] * a[b,a,d]
    h_q = lax.dot_general(w_q, a, (((2,), (1,)), ((0,), (0,))),
                          preferred_element_type=jnp.float32)

    # Gating multiply fused with the (lane-dense, unmasked) stores.
    ta_ref[...] = (a * h_a).astype(ta_ref.dtype)
    tq_ref[...] = (q * h_q).astype(tq_ref.dtype)

    # TODO(synk): for large Lq/La, tile Lq and use a two-pass (online) softmax
    # instead of materializing the full (Lq, La) e/p matrices in VMEM.


def attn_module(vq, va, *, bb=None):
    """Pallas AttnModule.forward on already lane-dense inputs.

    vq: (B, Lq, Dp), va: (B, La, Dp) -> (t_a (B, La, Dp), t_q (B, Lq, Dp))
    """
    B, Lq, Dp = vq.shape
    Ba, La, Dpa = va.shape
    assert B == Ba and Dp == Dpa and Dp % LANE == 0

    vmem_bytes, multi_tc = _tpu_vmem_and_cores()
    if bb is None:
        bb = _pick_bb(B, Lq, La, Dp, jnp.dtype(vq.dtype).itemsize,
                      vmem_bytes, multi_tc)
    assert B % bb == 0

    t_a, t_q = pl.pallas_call(
        _attn_kernel,
        out_shape=(
            jax.ShapeDtypeStruct((B, La, Dp), va.dtype),
            jax.ShapeDtypeStruct((B, Lq, Dp), vq.dtype),
        ),
        grid=(B // bb,),
        in_specs=[
            pl.BlockSpec((bb, Lq, Dp), lambda b: (b, 0, 0)),
            pl.BlockSpec((bb, La, Dp), lambda b: (b, 0, 0)),
        ],
        out_specs=(
            pl.BlockSpec((bb, La, Dp), lambda b: (b, 0, 0)),
            pl.BlockSpec((bb, Lq, Dp), lambda b: (b, 0, 0)),
        ),
        compiler_params=pltpu.CompilerParams(
            dimension_semantics=("parallel",),
            vmem_limit_bytes=(vmem_bytes * 3) // 4),
    )(vq, va)
    return t_a, t_q


# ----------------------------------------------------------------------------
# ProjModule: sigmoid(x W1 + b1) * tanh(x W2 + b2), q and a merged in one call
# ----------------------------------------------------------------------------
def _proj_kernel(x_ref, w1_ref, b1_ref, w2_ref, b2_ref, o_ref):
    x = x_ref[...]
    h1 = jnp.dot(x, w1_ref[...], preferred_element_type=jnp.float32) + b1_ref[...]
    h2 = jnp.dot(x, w2_ref[...], preferred_element_type=jnp.float32) + b2_ref[...]
    o_ref[...] = (jax.nn.sigmoid(h1) * jnp.tanh(h2)).astype(o_ref.dtype)


def proj_module_pair(in_q, in_a, w1p, b1p, w2p, b2p):
    """Both projections in ONE pallas_call: rows of in_q / in_a stacked, weights
    DMA'd once and kept resident across the row-tiled grid. Weights are
    pre-padded so the output feature dim is lane-dense (multiple of 128)."""
    # TODO(synk): ProjModule's training-time dropout is omitted (eval mode).
    B, Lq, F = in_q.shape
    _, La, _ = in_a.shape
    Dp = w1p.shape[1]
    nq, na = B * Lq, B * La
    n = nq + na
    x = jnp.concatenate([in_q.reshape(nq, F), in_a.reshape(na, F)], axis=0)
    tm = _pick_row_tile(n)

    out = pl.pallas_call(
        _proj_kernel,
        out_shape=jax.ShapeDtypeStruct((n, Dp), in_q.dtype),
        grid=(n // tm,),
        in_specs=[
            pl.BlockSpec((tm, F), lambda i: (i, 0)),
            pl.BlockSpec((F, Dp), lambda i: (0, 0)),   # weights stay resident
            pl.BlockSpec((1, Dp), lambda i: (0, 0)),
            pl.BlockSpec((F, Dp), lambda i: (0, 0)),
            pl.BlockSpec((1, Dp), lambda i: (0, 0)),
        ],
        out_specs=pl.BlockSpec((tm, Dp), lambda i: (i, 0)),
        compiler_params=pltpu.CompilerParams(
            dimension_semantics=("parallel",)),
    )(x, w1p, b1p, w2p, b2p)

    vq = out[:nq].reshape(B, Lq, Dp)
    va = out[nq:].reshape(B, La, Dp)
    return vq, va


# ----------------------------------------------------------------------------
# ConvModule: all convs + ReLU + max-pool + final Linear fused in ONE kernel
# ----------------------------------------------------------------------------
def _make_agg_kernel(n_convs):
    def kernel(*refs):
        ta_ref, tq_ref = refs[0], refs[1]
        conv_refs = refs[2:2 + 2 * n_convs]
        fcw_ref = refs[2 + 2 * n_convs]
        fcb_ref = refs[3 + 2 * n_convs]
        o_ref = refs[4 + 2 * n_convs]

        dout = conv_refs[0].shape[2]
        feats = []
        # aggregate(t_a, t_q): the first branch of the concat sees t_a.
        for x_ref in (ta_ref, tq_ref):
            x = x_ref[...]
            bsz, L, _ = x.shape
            for c in range(n_convs):
                w = conv_refs[2 * c][...]          # (k, Dp, Dout)
                b = conv_refs[2 * c + 1][...]      # (1, Dout)
                k = w.shape[0]
                lout = L - k + 1
                acc = jnp.zeros((bsz, lout, dout), jnp.float32)
                # Static tap loop (unrolled). The shifted time slices are tiny
                # VMEM-internal views at these shapes.
                # TODO(synk): for long sequences, replace the shifted slices
                # with a pltpu.roll shift-accumulate (XLU slot) so every tap
                # reuses one uniform full-length matmul.
                for j in range(k):
                    acc = acc + lax.dot_general(
                        x[:, j:j + lout, :], w[j],
                        (((2,), (0,)), ((), ())),
                        preferred_element_type=jnp.float32)
                acc = jnp.maximum(acc + b, 0.0)            # Conv1d bias + ReLU
                feats.append(jnp.max(acc, axis=1))         # max-pool over time

        # Final Linear fused in: accumulate per feature block (no concat).
        fcw = fcw_ref[...]
        y = jnp.zeros((feats[0].shape[0], fcw.shape[1]), jnp.float32)
        for i, f in enumerate(feats):
            y = y + jnp.dot(f.astype(fcw.dtype), fcw[i * dout:(i + 1) * dout, :],
                            preferred_element_type=jnp.float32)
        o_ref[...] = (y + fcb_ref[...]).astype(o_ref.dtype)

    return kernel


def aggregate_module(t_a, t_q, conv_ws, conv_bs, fc_w, fc_b):
    """ConvModule.forward fused into a single pallas_call: t_a / t_q are each
    read from HBM once (instead of once per kernel size), and the concat +
    final Linear happen in-VMEM."""
    B = t_a.shape[0]
    n_convs = len(conv_ws)
    args = [t_a, t_q]
    for w, b in zip(conv_ws, conv_bs):
        args += [w, b]
    args += [fc_w, fc_b]
    return pl.pallas_call(
        _make_agg_kernel(n_convs),
        out_shape=jax.ShapeDtypeStruct((B, fc_w.shape[1]), t_a.dtype),
    )(*args)


# ----------------------------------------------------------------------------
# Parameter preparation (one-time, lane-dense layout plumbing)
# ----------------------------------------------------------------------------
def prepare_params(params):
    """Pad the projection output dim and the conv input-channel dim to a
    multiple of 128 so every activation in the pipeline is lane-dense and no
    per-call pad/slice HBM passes are needed. Padded channels are exactly
    zero end-to-end (sigmoid(0)*tanh(0) = 0; zero conv weights)."""
    mem_dim = params["w1"].shape[1]
    Dp = _round_up(mem_dim, LANE)
    pad_c = Dp - mem_dim
    p = dict(params)
    if pad_c:
        p["w1"] = jnp.pad(params["w1"], ((0, 0), (0, pad_c)))
        p["b1"] = jnp.pad(params["b1"], ((0, 0), (0, pad_c)))
        p["w2"] = jnp.pad(params["w2"], ((0, 0), (0, pad_c)))
        p["b2"] = jnp.pad(params["b2"], ((0, 0), (0, pad_c)))
        p["conv_w"] = [jnp.pad(w, ((0, 0), (0, pad_c), (0, 0)))
                       for w in params["conv_w"]]
    return p


# ----------------------------------------------------------------------------
# Full CompareAggregate forward (3 Pallas launches total)
# ----------------------------------------------------------------------------
def compare_aggregate(in_q, in_a, params):
    p = prepare_params(params)
    vq, va = proj_module_pair(in_q, in_a, p["w1"], p["b1"], p["w2"], p["b2"])
    t_a, t_q = attn_module(vq, va)
    return aggregate_module(t_a, t_q, p["conv_w"], p["conv_b"],
                            p["fc_w"], p["fc_b"])


# ----------------------------------------------------------------------------
# Pure-JAX references (mirror the PyTorch module exactly)
# ----------------------------------------------------------------------------
def _proj_ref(x, w1, b1, w2, b2):
    return jax.nn.sigmoid(x @ w1 + b1) * jnp.tanh(x @ w2 + b2)


def _attn_ref(in_q, in_a):
    e_qa = jnp.einsum("bqd,bad->bqa", in_q, in_a)
    w_a = jax.nn.softmax(e_qa, axis=1)
    w_q = jax.nn.softmax(e_qa, axis=2)
    h_a = jnp.einsum("bqa,bqd->bad", w_a, in_q)
    h_q = jnp.einsum("bqa,bad->bqd", w_q, in_a)
    return in_a * h_a, in_q * h_q


def _conv_pool_ref(x, w, b):
    k = w.shape[0]
    lout = x.shape[1] - k + 1
    acc = sum(jnp.einsum("bld,do->blo", x[:, j:j + lout, :], w[j])
              for j in range(k)) + b
    return jnp.max(jax.nn.relu(acc), axis=1)


def _compare_aggregate_ref(in_q, in_a, params):
    vq = _proj_ref(in_q, params["w1"], params["b1"], params["w2"], params["b2"])
    va = _proj_ref(in_a, params["w1"], params["b1"], params["w2"], params["b2"])
    t_a, t_q = _attn_ref(vq, va)
    feats = ([_conv_pool_ref(t_a, w, b)
              for w, b in zip(params["conv_w"], params["conv_b"])] +
             [_conv_pool_ref(t_q, w, b)
              for w, b in zip(params["conv_w"], params["conv_b"])])
    conv_out = jnp.concatenate(feats, axis=1)
    return conv_out @ params["fc_w"] + params["fc_b"]


# ----------------------------------------------------------------------------
if __name__ == "__main__":
    keys = jax.random.split(jax.random.PRNGKey(0), 14)

    B, Lq, La = 2, 8, 16
    features, mem_dim, cov_dim = 32, 32, 32
    kernel_sizes = (1, 2, 3)

    in_q = jax.random.normal(keys[0], (B, Lq, features), jnp.float32)
    in_a = jax.random.normal(keys[1], (B, La, features), jnp.float32)

    params = {
        "w1": 0.3 * jax.random.normal(keys[2], (features, mem_dim), jnp.float32),
        "b1": 0.1 * jax.random.normal(keys[3], (1, mem_dim), jnp.float32),
        "w2": 0.3 * jax.random.normal(keys[4], (features, mem_dim), jnp.float32),
        "b2": 0.1 * jax.random.normal(keys[5], (1, mem_dim), jnp.float32),
        "conv_w": [0.1 * jax.random.normal(keys[6 + i], (k, mem_dim, cov_dim), jnp.float32)
                   for i, k in enumerate(kernel_sizes)],
        "conv_b": [0.1 * jax.random.normal(keys[9 + i], (1, cov_dim), jnp.float32)
                   for i in range(len(kernel_sizes))],
        "fc_w": 0.1 * jax.random.normal(
            keys[12], (2 * len(kernel_sizes) * cov_dim, 1), jnp.float32),
        "fc_b": 0.1 * jax.random.normal(keys[13], (1, 1), jnp.float32),
    }

    pp = prepare_params(params)

    # --- stage checks -------------------------------------------------------
    vq, va = proj_module_pair(in_q, in_a, pp["w1"], pp["b1"], pp["w2"], pp["b2"])
    jax.block_until_ready((vq, va))
    vq_ref = _proj_ref(in_q, params["w1"], params["b1"], params["w2"], params["b2"])
    va_ref = _proj_ref(in_a, params["w1"], params["b1"], params["w2"], params["b2"])
    assert jnp.allclose(vq[..., :mem_dim], vq_ref, atol=1e-4, rtol=1e-4)
    assert jnp.allclose(va[..., :mem_dim], va_ref, atol=1e-4, rtol=1e-4)
    assert jnp.allclose(vq[..., mem_dim:], 0.0)   # padded channels inert
    assert jnp.allclose(va[..., mem_dim:], 0.0)

    t_a, t_q = attn_module(vq, va)
    jax.block_until_ready((t_a, t_q))
    ra, rq = _attn_ref(vq_ref, va_ref)
    # tolerance loosened vs 1e-5 because of pl.reciprocal(approx=True) in the softmax
    assert jnp.allclose(t_a[..., :mem_dim], ra, atol=1e-2, rtol=1e-2)
    assert jnp.allclose(t_q[..., :mem_dim], rq, atol=1e-2, rtol=1e-2)

    agg = aggregate_module(t_a, t_q, pp["conv_w"], pp["conv_b"],
                           pp["fc_w"], pp["fc_b"])
    jax.block_until_ready(agg)

    # --- end-to-end CompareAggregate forward --------------------------------
    logit = compare_aggregate(in_q, in_a, params)
    jax.block_until_ready(logit)
    logit_ref = _compare_aggregate_ref(in_q, in_a, params)
    assert logit.shape == (B, 1)
    assert jnp.allclose(logit, logit_ref, atol=5e-2)
    assert jnp.allclose(agg, logit_ref, atol=5e-2)

    print("KERNEL_OK")
</pallas_src>

<mosaic_0001>
module attributes {stable_mosaic.version = 11 : i64} {
  func.func @_proj_kernel(%arg0: i32, %arg1: memref<48x32xf32, #tpu.memory_space<vmem>>, %arg2: memref<32x128xf32, #tpu.memory_space<vmem>>, %arg3: memref<1x128xf32, #tpu.memory_space<vmem>>, %arg4: memref<32x128xf32, #tpu.memory_space<vmem>>, %arg5: memref<1x128xf32, #tpu.memory_space<vmem>>, %arg6: memref<48x128xf32, #tpu.memory_space<vmem>>) attributes {dimension_semantics = [#tpu.dimension_semantics<parallel>], iteration_bounds = array<i64: 1>, scalar_prefetch = 0 : i64, scratch_operands = 0 : i64, tpu.core_type = #tpu.core_type<tc>, window_params = [{transform_indices = @transform_0, window_bounds = array<i64: 48, 32>}, {pipeline_mode = #tpu.pipeline_mode<synchronous>, transform_indices = @transform_1, window_bounds = array<i64: 32, 128>}, {pipeline_mode = #tpu.pipeline_mode<synchronous>, transform_indices = @transform_2, window_bounds = array<i64: 1, 128>}, {pipeline_mode = #tpu.pipeline_mode<synchronous>, transform_indices = @transform_3, window_bounds = array<i64: 32, 128>}, {pipeline_mode = #tpu.pipeline_mode<synchronous>, transform_indices = @transform_4, window_bounds = array<i64: 1, 128>}, {transform_indices = @transform_5, window_bounds = array<i64: 48, 128>}]} {
    %c0 = arith.constant 0 : index
    %c0_0 = arith.constant 0 : index
    %0 = vector.load %arg1[%c0, %c0_0] : memref<48x32xf32, #tpu.memory_space<vmem>>, vector<48x32xf32>
    %c0_1 = arith.constant 0 : index
    %c0_2 = arith.constant 0 : index
    %1 = vector.load %arg2[%c0_1, %c0_2] : memref<32x128xf32, #tpu.memory_space<vmem>>, vector<32x128xf32>
    %cst = arith.constant dense<0.000000e+00> : vector<48x128xf32>
    %2 = tpu.matmul %0, %1, %cst {dimension_numbers = #tpu.dot_dimension_numbers<[1], [0], [0], [1], [0, 0, 1, 1], [], []>} : vector<48x32xf32>, vector<32x128xf32>, vector<48x128xf32> -> vector<48x128xf32>
    %c0_3 = arith.constant 0 : index
    %c0_4 = arith.constant 0 : index
    %3 = vector.load %arg3[%c0_3, %c0_4] : memref<1x128xf32, #tpu.memory_space<vmem>>, vector<1x128xf32>
    %4 = vector.broadcast %3 : vector<1x128xf32> to vector<48x128xf32>
    %5 = arith.addf %2, %4 : vector<48x128xf32>
    %c0_5 = arith.constant 0 : index
    %c0_6 = arith.constant 0 : index
    %6 = vector.load %arg4[%c0_5, %c0_6] : memref<32x128xf32, #tpu.memory_space<vmem>>, vector<32x128xf32>
    %cst_7 = arith.constant dense<0.000000e+00> : vector<48x128xf32>
    %7 = tpu.matmul %0, %6, %cst_7 {dimension_numbers = #tpu.dot_dimension_numbers<[1], [0], [0], [1], [0, 0, 1, 1], [], []>} : vector<48x32xf32>, vector<32x128xf32>, vector<48x128xf32> -> vector<48x128xf32>
    %c0_8 = arith.constant 0 : index
    %c0_9 = arith.constant 0 : index
    %8 = vector.load %arg5[%c0_8, %c0_9] : memref<1x128xf32, #tpu.memory_space<vmem>>, vector<1x128xf32>
    %9 = vector.broadcast %8 : vector<1x128xf32> to vector<48x128xf32>
    %10 = arith.addf %7, %9 : vector<48x128xf32>
    %11 = arith.negf %5 : vector<48x128xf32>
    %12 = math.exp %11 : vector<48x128xf32>
    %cst_10 = arith.constant 1.000000e+00 : f32
    %13 = vector.broadcast %cst_10 : f32 to vector<48x128xf32>
    %14 = arith.addf %13, %12 : vector<48x128xf32>
    %15 = arith.divf %13, %14 : vector<48x128xf32>
    %16 = math.tanh %10 : vector<48x128xf32>
    %17 = arith.mulf %15, %16 : vector<48x128xf32>
    %c0_11 = arith.constant 0 : index
    %c0_12 = arith.constant 0 : index
    %18 = vector.load %arg6[%c0_11, %c0_12] : memref<48x128xf32, #tpu.memory_space<vmem>>, vector<48x128xf32>
    tpu.vector_store %arg6[%c0_11, %c0_12], %17 {strides = array<i32>} : memref<48x128xf32, #tpu.memory_space<vmem>>, vector<48x128xf32>,
    return
  }
  func.func @transform_0(%arg0: i32) -> (i32, i32) {
    %c0_i32 = arith.constant 0 : i32
    %c0_i32_0 = arith.constant 0 : i32
    return %arg0, %c0_i32 : i32, i32
  }
  func.func @transform_1(%arg0: i32) -> (i32, i32) {
    %c0_i32 = arith.constant 0 : i32
    %c0_i32_0 = arith.constant 0 : i32
    %c0_i32_1 = arith.constant 0 : i32
    return %c0_i32, %c0_i32_0 : i32, i32
  }
  func.func @transform_2(%arg0: i32) -> (i32, i32) {
    %c0_i32 = arith.constant 0 : i32
    %c0_i32_0 = arith.constant 0 : i32
    %c0_i32_1 = arith.constant 0 : i32
    return %c0_i32, %c0_i32_0 : i32, i32
  }
  func.func @transform_3(%arg0: i32) -> (i32, i32) {
    %c0_i32 = arith.constant 0 : i32
    %c0_i32_0 = arith.constant 0 : i32
    %c0_i32_1 = arith.constant 0 : i32
    return %c0_i32, %c0_i32_0 : i32, i32
  }
  func.func @transform_4(%arg0: i32) -> (i32, i32) {
    %c0_i32 = arith.constant 0 : i32
    %c0_i32_0 = arith.constant 0 : i32
    %c0_i32_1 = arith.constant 0 : i32
    return %c0_i32, %c0_i32_0 : i32, i32
  }
  func.func @transform_5(%arg0: i32) -> (i32, i32) {
    %c0_i32 = arith.constant 0 : i32
    %c0_i32_0 = arith.constant 0 : i32
    return %arg0, %c0_i32 : i32, i32
  }
}

</mosaic_0001>

<llo_original>
// kernel: tpu_custom_call.1
$region0: #{tpu_custom_call.1}
  #allocation0 [shape = 'u32[]', space=smem, size = 0x4, offset = 0x4, fixed_abs, tag = 'smem constant byte address 0x4 - core index']
  #allocation1 [shape = 'u32[144,128]{1,0:T(1,128)}', space=vmem, size = 0x12000, scoped, tag = 'internal scratch']
  %s0 = inlined_call_operand.vmem [shape: f32[48,32], index: 0, kind: input, shape index: {}]
  %s1 = inlined_call_operand.vmem [shape: f32[32,128], index: 1, kind: input, shape index: {}]
  %s2 = inlined_call_operand.vmem [shape: f32[1,128], index: 2, kind: input, shape index: {}]
  %s3 = inlined_call_operand.vmem [shape: f32[32,128], index: 3, kind: input, shape index: {}]
  %s4 = inlined_call_operand.vmem [shape: f32[1,128], index: 4, kind: input, shape index: {}]
  %s5 = inlined_call_operand.hbm [shape: f32[48,128], index: 5, kind: output, shape index: {}]
  %s6 = sld [smem:[#allocation0]]
  $region30: #{tpu_custom_call.1} parent=0
    _
  %s8 = ssub.s32 1, %s6
  %s9 = scalar_select 0, %s8, %s6
  $region1: #{tpu_custom_call.1} parent=0
    #allocation2 [shape = 'u8[24576]{0}', space=vmem, size = 0x6000, scoped, tag = 'output window, operand 0, single buffered']
    #allocation3 [shape = 's32[1]{0}', space=sflag, size = 0x4, scoped, tag = 'scoped memory for tpu_custom_call.1']
    %10 = vsyncpa [#allocation3], 0
    // Predicated region
    $region2: #{tpu_custom_call.1} parent=1 // pred_check
      _
    $region3: #{tpu_custom_call.1} parent=1 // pred_check_branch
      %12 = sbr.rel (0) target = $region5
    $region4: #{tpu_custom_call.1} parent=1 // pred_region
      _
    $region5: #{tpu_custom_call.1} parent=1 // pred_fallthru
      _
    // Predicated region
    $region6: #{tpu_custom_call.1} parent=1 // pred_check
      _
    $region7: #{tpu_custom_call.1} parent=1 // pred_check_branch
      %14 = sbr.rel (0) target = $region9
    $region8: #{tpu_custom_call.1} parent=1 // pred_region
      _
    $region9: #{tpu_custom_call.1} parent=1 // pred_fallthru
      _
    // Predicated region
    $region10: #{tpu_custom_call.1} parent=1 // pred_check
      _
    $region11: #{tpu_custom_call.1} parent=1 // pred_check_branch
      %16 = sbr.rel (0) target = $region13
    $region12: #{tpu_custom_call.1} parent=1 // pred_region
      _
    $region13: #{tpu_custom_call.1} parent=1 // pred_fallthru
      _
    // Predicated region
    $region14: #{tpu_custom_call.1} parent=1 // pred_check
      _
    $region15: #{tpu_custom_call.1} parent=1 // pred_check_branch
      %18 = sbr.rel (0) target = $region17
    $region16: #{tpu_custom_call.1} parent=1 // pred_region
      _
    $region17: #{tpu_custom_call.1} parent=1 // pred_fallthru
      _
    // Predicated region
    $region18: #{tpu_custom_call.1} parent=1 // pred_check
      _
    $region19: #{tpu_custom_call.1} parent=1 // pred_check_branch
      %20 = sbr.rel (0) target = $region21
    $region20: #{tpu_custom_call.1} parent=1 // pred_region
      _
    $region21: #{tpu_custom_call.1} parent=1 // pred_fallthru
      _
    %v21 = vld [vmem:[%s0] sm:$0xff]
    %v22 = vld [vmem:[%s0 + $0x8] sm:$0xff]
    %v23 = vld [vmem:[%s0 + $0x10] sm:$0xff]
    %v24 = vld [vmem:[%s0 + $0x18] sm:$0xff]
    %v25 = vld [vmem:[%s0 + $0x20] sm:$0xff]
    %v26 = vld [vmem:[%s0 + $0x28] sm:$0xff]
    %v27 = vld [vmem:[%s1] sm:$0xff]
    %v28 = vld [vmem:[%s1 + $0x8] sm:$0xff]
    %v29 = vld [vmem:[%s1 + $0x10] sm:$0xff]
    %v30 = vld [vmem:[%s1 + $0x18] sm:$0xff]
    %v31 = vld [vmem:[%s2] sm:$0x1]
    %v33 = vlaneseq
    %v34 = vshrl.u32 %v33, 7
    %v35 = vsub.s32 0, %v34
    %v36 = vrot.slane %v31, %v35
    %vm38 = vcmask 261120
    %v40 = vsel %vm38, %v21, 0
    %v43 = vsel %vm38, %v22, 0
    %v46 = vsel %vm38, %v23, 0
    %v49 = vsel %vm38, %v24, 0
    %v52 = vsel %vm38, %v25, 0
    %v55 = vsel %vm38, %v26, 0
    %57 = vmatprep.subr.mxu0 0.0
    %58 = vmatpush1.msra.mxu0 0.0
    %59 = vmatprep.subr.mxu0 0.0
    %60 = vmatpush1.msra.mxu0 0.0
    %61 = vmatprep.subr.mxu0 0.0
    %62 = vmatpush1.msra.mxu0 0.0
    %63 = vmatprep.subr.mxu0 0.0
    %64 = vmatpush1.msra.mxu0 0.0
    %65 = vmatprep.subr.mxu0 0.0
    %66 = vmatpush1.msra.mxu0 0.0
    %67 = vmatprep.subr.mxu0 0.0
    %68 = vmatpush1.msra.mxu0 0.0
    %69 = vmatprep.subr.mxu0 0.0
    %70 = vmatpush1.msra.mxu0 0.0
    %71 = vmatprep.subr.mxu0 0.0
    %72 = vmatpush1.msra.mxu0 0.0
    %73 = vmatprep.subr.mxu0 0.0
    %74 = vmatpush1.msra.mxu0 0.0
    %75 = vmatprep.subr.mxu0 0.0
    %76 = vmatpush1.msra.mxu0 0.0
    %77 = vmatprep.subr.mxu0 0.0
    %78 = vmatpush1.msra.mxu0 0.0
    %79 = vmatprep.subr.mxu0 0.0
    %80 = vmatpush1.msra.mxu0 0.0
    %81 = vmatprep.subr.mxu0 0.0
    %82 = vmatpush1.msra.mxu0 %v30
    %83 = vmatprep.subr.mxu0 0.0
    %84 = vmatpush1.msra.mxu0 %v29
    %85 = vmatprep.subr.mxu0 0.0
    %86 = vmatpush1.msra.mxu0 %v28
    %87 = vmatprep.subr.mxu0 0.0
    %88 = vmatpush1.msra.mxu0 %v27
    %89 = vmatprep.subr.mxu0 0.0
    %90 = vmatpush2.msra.mxu0 0.0
    %91 = vmatprep.subr.mxu0 0.0
    %92 = vmatpush2.msra.mxu0 0.0
    %93 = vmatprep.subr.mxu0 0.0
    %94 = vmatpush2.msra.mxu0 0.0
    %95 = vmatprep.subr.mxu0 0.0
    %96 = vmatpush2.msra.mxu0 0.0
    %97 = vmatprep.subr.mxu0 0.0
    %98 = vmatpush2.msra.mxu0 0.0
    %99 = vmatprep.subr.mxu0 0.0
    %100 = vmatpush2.msra.mxu0 0.0
    %101 = vmatprep.subr.mxu0 0.0
    %102 = vmatpush2.msra.mxu0 0.0
    %103 = vmatprep.subr.mxu0 0.0
    %104 = vmatpush2.msra.mxu0 0.0
    %105 = vmatprep.subr.mxu0 0.0
    %106 = vmatpush2.msra.mxu0 0.0
    %107 = vmatprep.subr.mxu0 0.0
    %108 = vmatpush2.msra.mxu0 0.0
    %109 = vmatprep.subr.mxu0 0.0
    %110 = vmatpush2.msra.mxu0 0.0
    %111 = vmatprep.subr.mxu0 0.0
    %112 = vmatpush2.msra.mxu0 0.0
    %113 = vmatprep.subr.mxu0 0.0
    %114 = vmatpush2.msra.mxu0 0.0
    %115 = vmatprep.subr.mxu0 0.0
    %116 = vmatpush2.msra.mxu0 0.0
    %117 = vmatprep.subr.mxu0 0.0
    %118 = vmatpush2.msra.mxu0 0.0
    %119 = vmatprep.subr.mxu0 0.0
    %120 = vmatpush2.msra.mxu0 0.0
    %121 = vmatprep.mubr.f32.mxu0 0.0
    %122 = vmatmul.mubr.f32.gmra.mxu0 %v40
    %v123 = vpop.f32.mrf.mxu0
    %v124 = vadd.f32 %v36, %v123
    %v125 = vpop.f32.mrf.mxu0
    %126 = vmatprep.mubr.f32.mxu0 0.0
    %127 = vmatmul.mubr.f32.gmra.mxu0 %v43
    %v128 = vpop.f32.mrf.mxu0
    %v129 = vadd.f32 %v36, %v128
    %v130 = vpop.f32.mrf.mxu0
    %131 = vmatprep.mubr.f32.mxu0 0.0
    %132 = vmatmul.mubr.f32.gmra.mxu0 %v46
    %v133 = vpop.f32.mrf.mxu0
    %v134 = vadd.f32 %v36, %v133
    %v135 = vpop.f32.mrf.mxu0
    %136 = vmatprep.mubr.f32.mxu0 0.0
    %137 = vmatmul.mubr.f32.gmra.mxu0 %v49
    %v138 = vpop.f32.mrf.mxu0
    %v139 = vadd.f32 %v36, %v138
    %v140 = vpop.f32.mrf.mxu0
    %141 = vmatprep.mubr.f32.mxu0 0.0
    %142 = vmatmul.mubr.f32.gmra.mxu0 %v52
    %v143 = vpop.f32.mrf.mxu0
    %v144 = vadd.f32 %v36, %v143
    %v145 = vpop.f32.mrf.mxu0
    %146 = vmatprep.mubr.f32.mxu0 0.0
    %147 = vmatmul.mubr.f32.gmra.mxu0 %v55
    %v148 = vpop.f32.mrf.mxu0
    %v149 = vadd.f32 %v36, %v148
    %v150 = vpop.f32.mrf.mxu0
    %151 = vdwg.mxu0
    %v152 = vld [vmem:[%s3] sm:$0xff]
    %v153 = vld [vmem:[%s3 + $0x8] sm:$0xff]
    %v154 = vld [vmem:[%s3 + $0x10] sm:$0xff]
    %v155 = vld [vmem:[%s3 + $0x18] sm:$0xff]
    %v156 = vld [vmem:[%s4] sm:$0x1]
    %v158 = vlaneseq
    %v159 = vshrl.u32 %v158, 7
    %v160 = vsub.s32 0, %v159
    %v161 = vrot.slane %v156, %v160
    %163 = vmatprep.subr.mxu0 0.0
    %164 = vmatpush1.msra.mxu0 0.0
    %165 = vmatprep.subr.mxu0 0.0
    %166 = vmatpush1.msra.mxu0 0.0
    %167 = vmatprep.subr.mxu0 0.0
    %168 = vmatpush1.msra.mxu0 0.0
    %169 = vmatprep.subr.mxu0 0.0
    %170 = vmatpush1.msra.mxu0 0.0
    %171 = vmatprep.subr.mxu0 0.0
    %172 = vmatpush1.msra.mxu0 0.0
    %173 = vmatprep.subr.mxu0 0.0
    %174 = vmatpush1.msra.mxu0 0.0
    %175 = vmatprep.subr.mxu0 0.0
    %176 = vmatpush1.msra.mxu0 0.0
    %177 = vmatprep.subr.mxu0 0.0
    %178 = vmatpush1.msra.mxu0 0.0
    %179 = vmatprep.subr.mxu0 0.0
    %180 = vmatpush1.msra.mxu0 0.0
    %181 = vmatprep.subr.mxu0 0.0
    %182 = vmatpush1.msra.mxu0 0.0
    %183 = vmatprep.subr.mxu0 0.0
    %184 = vmatpush1.msra.mxu0 0.0
    %185 = vmatprep.subr.mxu0 0.0
    %186 = vmatpush1.msra.mxu0 0.0
    %187 = vmatprep.subr.mxu0 0.0
    %188 = vmatpush1.msra.mxu0 %v155
    %189 = vmatprep.subr.mxu0 0.0
    %190 = vmatpush1.msra.mxu0 %v154
    %191 = vmatprep.subr.mxu0 0.0
    %192 = vmatpush1.msra.mxu0 %v153
    %193 = vmatprep.subr.mxu0 0.0
    %194 = vmatpush1.msra.mxu0 %v152
    %195 = vmatprep.subr.mxu0 0.0
    %196 = vmatpush2.msra.mxu0 0.0
    %197 = vmatprep.subr.mxu0 0.0
    %198 = vmatpush2.msra.mxu0 0.0
    %199 = vmatprep.subr.mxu0 0.0
    %200 = vmatpush2.msra.mxu0 0.0
    %201 = vmatprep.subr.mxu0 0.0
    %202 = vmatpush2.msra.mxu0 0.0
    %203 = vmatprep.subr.mxu0 0.0
    %204 = vmatpush2.msra.mxu0 0.0
    %205 = vmatprep.subr.mxu0 0.0
    %206 = vmatpush2.msra.mxu0 0.0
    %207 = vmatprep.subr.mxu0 0.0
    %208 = vmatpush2.msra.mxu0 0.0
    %209 = vmatprep.subr.mxu0 0.0
    %210 = vmatpush2.msra.mxu0 0.0
    %211 = vmatprep.subr.mxu0 0.0
    %212 = vmatpush2.msra.mxu0 0.0
    %213 = vmatprep.subr.mxu0 0.0
    %214 = vmatpush2.msra.mxu0 0.0
    %215 = vmatprep.subr.mxu0 0.0
    %216 = vmatpush2.msra.mxu0 0.0
    %217 = vmatprep.subr.mxu0 0.0
    %218 = vmatpush2.msra.mxu0 0.0
    %219 = vmatprep.subr.mxu0 0.0
    %220 = vmatpush2.msra.mxu0 0.0
    %221 = vmatprep.subr.mxu0 0.0
    %222 = vmatpush2.msra.mxu0 0.0
    %223 = vmatprep.subr.mxu0 0.0
    %224 = vmatpush2.msra.mxu0 0.0
    %225 = vmatprep.subr.mxu0 0.0
    %226 = vmatpush2.msra.mxu0 0.0
    %227 = vmatprep.mubr.f32.mxu0 0.0
    %228 = vmatmul.mubr.f32.gmra.mxu0 %v40
    %v229 = vpop.f32.mrf.mxu0
    %v230 = vadd.f32 %v161, %v229
    %v231 = vpop.f32.mrf.mxu0
    %232 = vmatprep.mubr.f32.mxu0 0.0
    %233 = vmatmul.mubr.f32.gmra.mxu0 %v43
    %v234 = vpop.f32.mrf.mxu0
    %v235 = vadd.f32 %v161, %v234
    %v236 = vpop.f32.mrf.mxu0
    %237 = vmatprep.mubr.f32.mxu0 0.0
    %238 = vmatmul.mubr.f32.gmra.mxu0 %v46
    %v239 = vpop.f32.mrf.mxu0
    %v240 = vadd.f32 %v161, %v239
    %v241 = vpop.f32.mrf.mxu0
    %242 = vmatprep.mubr.f32.mxu0 0.0
    %243 = vmatmul.mubr.f32.gmra.mxu0 %v49
    %v244 = vpop.f32.mrf.mxu0
    %v245 = vadd.f32 %v161, %v244
    %v246 = vpop.f32.mrf.mxu0
    %247 = vmatprep.mubr.f32.mxu0 0.0
    %248 = vmatmul.mubr.f32.gmra.mxu0 %v52
    %v249 = vpop.f32.mrf.mxu0
    %v250 = vadd.f32 %v161, %v249
    %v251 = vpop.f32.mrf.mxu0
    %252 = vmatprep.mubr.f32.mxu0 0.0
    %253 = vmatmul.mubr.f32.gmra.mxu0 %v55
    %v254 = vpop.f32.mrf.mxu0
    %v255 = vadd.f32 %v161, %v254
    %v256 = vpop.f32.mrf.mxu0
    %257 = vdwg.mxu0
    %v258 = vxor.u32 %v124, 2147483648
    %v259 = vxor.u32 %v129, 2147483648
    %v260 = vxor.u32 %v134, 2147483648
    %v261 = vxor.u32 %v139, 2147483648
    %v262 = vxor.u32 %v144, 2147483648
    %v263 = vxor.u32 %v149, 2147483648
    %v264 = vmul.f32 %v258, 1.442695
    %v265 = vpow.pop %v264
    %v266 = vmul.f32 %v259, 1.442695
    %v267 = vpow.pop %v266
    %v268 = vmul.f32 %v260, 1.442695
    %v269 = vpow.pop %v268
    %v270 = vmul.f32 %v261, 1.442695
    %v271 = vpow.pop %v270
    %v272 = vmul.f32 %v262, 1.442695
    %v273 = vpow.pop %v272
    %v274 = vmul.f32 %v263, 1.442695
    %v275 = vpow.pop %v274
    %v276 = vadd.f32 %v265, 1.0
    %v277 = vadd.f32 %v267, 1.0
    %v278 = vadd.f32 %v269, 1.0
    %v279 = vadd.f32 %v271, 1.0
    %v280 = vadd.f32 %v273, 1.0
    %v281 = vadd.f32 %v275, 1.0
    %v282 = vrcp.pop %v276
    %v283 = vmul.f32 1.0, %v282
    %v284 = vrcp.pop %v277
    %v285 = vmul.f32 1.0, %v284
    %v286 = vrcp.pop %v278
    %v287 = vmul.f32 1.0, %v286
    %v288 = vrcp.pop %v279
    %v289 = vmul.f32 1.0, %v288
    %v290 = vrcp.pop %v280
    %v291 = vmul.f32 1.0, %v290
    %v292 = vrcp.pop %v281
    %v293 = vmul.f32 1.0, %v292
    %v294 = vtanh.pop %v230
    %v295 = vtanh.pop %v235
    %v296 = vtanh.pop %v240
    %v297 = vtanh.pop %v245
    %v298 = vtanh.pop %v250
    %v299 = vtanh.pop %v255
    %v300 = vmul.f32 %v283, %v294
    %v301 = vmul.f32 %v285, %v295
    %v302 = vmul.f32 %v287, %v296
    %v303 = vmul.f32 %v289, %v297
    %v304 = vmul.f32 %v291, %v298
    %v305 = vmul.f32 %v293, %v299
    %306 = vst [vmem:[#allocation2] sm:$0xff] %v300
    %307 = vst [vmem:[#allocation2 + $0x8] sm:$0xff] %v301
    %308 = vst [vmem:[#allocation2 + $0x10] sm:$0xff] %v302
    %309 = vst [vmem:[#allocation2 + $0x18] sm:$0xff] %v303
    %310 = vst [vmem:[#allocation2 + $0x20] sm:$0xff] %v304
    %311 = vst [vmem:[#allocation2 + $0x28] sm:$0xff] %v305
    // Predicated region
    $region22: #{tpu_custom_call.1} parent=1 // pred_check
      _
    $region23: #{tpu_custom_call.1} parent=1 // pred_check_branch
      %313 = sbr.rel (0) target = $region25
    $region24: #{tpu_custom_call.1} parent=1 // pred_region
      %s315 = ssub.s32 768, 768
      %316 = vsyncadd [#allocation3], %s315
      %s317 = sshll.u32 [#allocation2], 4
      %s318 = int_to_ptr.vmem [resolvable:$true] %s317
      %323 = dma.vmem_to_hbm [thread:$0]  %s318, 768, %s5, [#allocation3], 128, 128, 8
    $region25: #{tpu_custom_call.1} parent=1 // pred_fallthru
      _
    // Predicated region
    $region26: #{tpu_custom_call.1} parent=1 // pred_check
      _
    $region27: #{tpu_custom_call.1} parent=1 // pred_check_branch
      %325 = sbr.rel (0) target = $region29
    $region28: #{tpu_custom_call.1} parent=1 // pred_region
      %326 = dma.done [#allocation3], 768
    $region29: #{tpu_custom_call.1} parent=1 // pred_fallthru
      _
    %327 = vsyncpa [#allocation3], 1

</llo_original>
